<compile_context>
chip_gen: v7x
topology: tpu7x:2x2x1
jax: 0.10.0
libtpu: 0.0.40
codegen_flags: <defaults>
</compile_context>

<pallas_src>
import jax
import jax.numpy as jnp
from jax.experimental import pallas as pl
from jax.experimental.pallas import tpu as pltpu


# ----------------------------- Pallas kernel --------------------------------

def _alpha_scale_kernel(x_ref, s_ref, o_ref):
    # x_ref: (ROW_TILE, LANE_TILE)  VMEM
    # s_ref: (ROW_TILE, 1) or (1, LANE_TILE) VMEM  (same dtype as x)
    # o_ref: (ROW_TILE, LANE_TILE)  VMEM
    o_ref[...] = (x_ref[...] * s_ref[...]).astype(o_ref.dtype)


# ------------------------------ tiling logic ---------------------------------

def _round_up(v, m):
    return ((v + m - 1) // m) * m


def _select_tuning():
    """(target_block_bytes, vmem_limit_bytes) picked per TPU generation."""
    target_block = 4 * 1024 * 1024
    vmem_limit = 48 * 1024 * 1024
    try:
        info = pltpu.get_tpu_info()
        cap = getattr(info, "vmem_capacity_bytes", None)
        if cap is not None:
            if cap <= 96 * 1024 * 1024:
                # v7x-class: 64 MiB VMEM, ~3.2 TB/s HBM -> bigger blocks to
                # amortize per-step overhead; stay well under physical VMEM.
                target_block = 6 * 1024 * 1024
                vmem_limit = 48 * 1024 * 1024
            else:
                # v5e/v6e-class: 128 MiB VMEM.
                target_block = 4 * 1024 * 1024
                vmem_limit = 64 * 1024 * 1024
    except Exception:
        pass
    return target_block, vmem_limit


def _alpha_scale_2d(x2d, scale, *, scale_is_row, donate=False):
    """Per-row (scale_is_row=False) or per-lane (scale_is_row=True) scaling.

    x2d:   (R, L) array
    scale: (R, 1) if per-row, (1, L) if per-lane; same dtype as x2d.
    """
    R, L = x2d.shape
    bytes_per = jnp.dtype(x2d.dtype).itemsize
    target_block_bytes, vmem_limit = _select_tuning()

    # Packed-sublane multiple for the dtype: f32 -> 8, bf16 -> 16, int8 -> 32.
    sub_mult = max(8, 32 // bytes_per)

    # Lane tile: large multiple of 128 when possible, else full extent.
    if L % 128 == 0:
        lane_tile = min(L, 8192)
    else:
        lane_tile = L  # fallback path only; callers keep L 128-aligned when they can

    # Row tile from the per-block VMEM budget.
    rows = max(sub_mult, target_block_bytes // max(1, lane_tile * bytes_per))
    row_tile = max(sub_mult, (rows // sub_mult) * sub_mult)
    row_tile = min(row_tile, _round_up(R, sub_mult))

    # Ensure at least 2 grid steps along a parallel axis when the problem
    # allows it (feeds both v7x TensorCores).
    if pl.cdiv(R, row_tile) * pl.cdiv(L, lane_tile) < 2:
        if R > sub_mult:
            row_tile = _round_up(pl.cdiv(R, 2), sub_mult)
        elif L % 128 == 0 and L >= 256:
            lane_tile = _round_up(pl.cdiv(L, 2), 128)

    grid = (pl.cdiv(R, row_tile), pl.cdiv(L, lane_tile))

    if scale_is_row:
        s_block, s_map = (1, lane_tile), (lambda i, j: (0, j))
    else:
        s_block, s_map = (row_tile, 1), (lambda i, j: (i, 0))

    return pl.pallas_call(
        _alpha_scale_kernel,
        out_shape=jax.ShapeDtypeStruct((R, L), x2d.dtype),
        grid_spec=pltpu.PrefetchScalarGridSpec(
            num_scalar_prefetch=0,
            grid=grid,
            in_specs=[
                pl.BlockSpec((row_tile, lane_tile), lambda i, j: (i, j)),
                pl.BlockSpec(s_block, s_map),
            ],
            # Lane axis j kept innermost so the scale column block (layout A)
            # is constant across the inner loop and its DMA is elided.
            out_specs=pl.BlockSpec((row_tile, lane_tile), lambda i, j: (i, j)),
        ),
        compiler_params=pltpu.CompilerParams(
            dimension_semantics=("parallel", "parallel"),
            vmem_limit_bytes=vmem_limit,
        ),
        input_output_aliases=({0: 0} if donate else {}),
    )(x2d, scale)


# ------------------------------ AlphaLayer ----------------------------------

def _get_ch_indice(min_width, max_width, width_offset, max_ch):
    ch_offset = int(width_offset * max_ch / max_width)
    num_offset = int((max_width - min_width) / width_offset + 0.0001)
    min_ch = max_ch - ch_offset * num_offset
    assert min_ch > 0
    indice = [min_ch + i * ch_offset for i in range(num_offset + 1)]
    assert indice[0] == min_ch
    assert indice[-1] == max_ch
    return sorted(set(indice))


class AlphaLayer:
    """JAX/Pallas port of the DMCP AlphaLayer forward pass."""

    def __init__(self, channels, width, prob_type='exp', alpha=None):
        assert prob_type in ('exp', 'sigmoid')
        self.prob_type = prob_type
        self.channels = channels
        ch_indice = _get_ch_indice(width['min'], width['max'],
                                   width['offset'], channels)
        self.min_ch = ch_indice[0]
        for i in range(1, len(ch_indice) - 1):
            assert ch_indice[i + 1] - ch_indice[i] == ch_indice[i] - ch_indice[i - 1]
        self.num_groups = len(ch_indice) - 1
        self.group_size = (ch_indice[1] - ch_indice[0]) if self.num_groups > 0 else 0
        assert self.group_size * self.num_groups + self.min_ch == self.channels
        if self.num_groups > 0:
            if alpha is None:
                alpha = jnp.zeros((self.num_groups,), jnp.float32)
            self.alpha = jnp.asarray(alpha, jnp.float32)
        else:
            self.alpha = None

    # ---- prob helpers (tiny scalar math; plain JAX glue) ----
    def get_condition_prob(self):
        if self.prob_type == 'exp':
            a = jnp.maximum(self.alpha, 0.0)   # clamp(min=0)
            return jnp.exp(-a)
        else:  # sigmoid
            return jax.nn.sigmoid(self.alpha)

    def get_marginal_prob(self):
        return jnp.cumprod(self.get_condition_prob(), axis=0)

    def expected_channel(self):
        if self.num_groups == 0:
            return float(self.min_ch)
        return jnp.sum(self.get_marginal_prob()) * self.group_size + self.min_ch

    def _channel_scale(self):
        """Per-channel multiplier of length `channels` (f32)."""
        marginal = self.get_marginal_prob()                         # (G,)
        group_scale = jnp.repeat(marginal, self.group_size)         # (G*gs,)
        head = jnp.ones((self.min_ch,), jnp.float32)
        return jnp.concatenate([head, group_scale], axis=0)         # (C,)

    # ---- forward ----
    def __call__(self, x, donate=False):
        # x: NCHW, shape (N, C, H, W)
        N, C, H, W = x.shape
        if self.num_groups == 0 or C == self.min_ch:
            return x
        assert C == self.channels, (
            f"runtime channel count {C} != configured channels {self.channels}")

        # No f32 round-trip: scale lives in x.dtype (output dtype == input dtype).
        scale_c = self._channel_scale().astype(x.dtype)              # (C,)
        HW = H * W

        if HW % 128 == 0:
            # Layout A: row = (n, c) plane, lanes = H*W; per-row scale column.
            x2d = x.reshape(N * C, HW)                               # free reshape
            s = jnp.tile(scale_c, N).reshape(N * C, 1)
            y2d = _alpha_scale_2d(x2d, s, scale_is_row=False, donate=donate)
        elif (C * HW) % 128 == 0:
            # Layout B: row = batch sample, lanes = C*H*W; per-lane scale row
            # broadcast across sublanes.  Keeps stores lane-dense even when
            # H*W is small / not 128-aligned (7x7, 14x14, 8x8, ...).
            x2d = x.reshape(N, C * HW)                               # free reshape
            s = jnp.repeat(scale_c, HW).reshape(1, C * HW)
            y2d = _alpha_scale_2d(x2d, s, scale_is_row=True, donate=donate)
        else:
            # Fallback: lane axis = H*W (< 128-aligned -> masked partial stores).
            # TODO(synk): pad the lane extent to a 128 multiple for fully
            # lane-dense stores in this residual case.
            x2d = x.reshape(N * C, HW)
            s = jnp.tile(scale_c, N).reshape(N * C, 1)
            y2d = _alpha_scale_2d(x2d, s, scale_is_row=False, donate=donate)

        return y2d.reshape(N, C, H, W)                               # free reshape


# ------------------------------- reference -----------------------------------

def _reference_forward(layer, x):
    """Pure-JAX reference matching the PyTorch forward exactly."""
    N, C, H, W = x.shape
    if layer.num_groups == 0 or C == layer.min_ch:
        return x
    num_groups = (C - layer.min_ch) // layer.group_size
    prob = layer.get_marginal_prob()[:num_groups]                   # (G,)
    tp_x = jnp.transpose(x, (1, 0, 2, 3))                           # (C, N, H, W)
    head = tp_x[:layer.min_ch]
    tail = tp_x[layer.min_ch:]
    tail = tail.reshape(num_groups, -1) * prob[:, None]
    tail = tail.reshape(C - layer.min_ch, N, H, W)
    return jnp.transpose(jnp.concatenate([head, tail], axis=0), (1, 0, 2, 3))


# --------------------------------- main ---------------------------------------

if __name__ == "__main__":
    key = jax.random.PRNGKey(0)
    kx1, kx2, ka = jax.random.split(key, 3)

    # channels=16, width -> indices [4, 8, 12, 16]: min_ch=4, 3 groups of size 4.
    channels = 16
    width = {'min': 0.25, 'max': 1.0, 'offset': 0.25}
    alpha_init = jax.random.uniform(ka, (3,), jnp.float32, 0.0, 1.0)
    layer = AlphaLayer(channels, width, prob_type='exp', alpha=alpha_init)

    # Case 1: H*W = 64 (not 128-aligned) -> lane-dense folded layout B.
    x1 = jax.random.normal(kx1, (2, channels, 8, 8), jnp.float32)   # NCHW
    y1 = jax.block_until_ready(layer(x1))
    y1_ref = jax.block_until_ready(_reference_forward(layer, x1))
    assert y1.shape == x1.shape
    assert jnp.max(jnp.abs(y1 - y1_ref)) < 1e-5

    # Case 2: H*W = 128 (128-aligned) -> per-plane layout A.
    x2 = jax.random.normal(kx2, (2, channels, 16, 8), jnp.float32)  # NCHW
    y2 = jax.block_until_ready(layer(x2))
    y2_ref = jax.block_until_ready(_reference_forward(layer, x2))
    assert y2.shape == x2.shape
    assert jnp.max(jnp.abs(y2 - y2_ref)) < 1e-5

    print("KERNEL_OK")
</pallas_src>

<mosaic_0001>
module attributes {stable_mosaic.version = 11 : i64} {
  func.func @_alpha_scale_kernel(%arg0: i32, %arg1: i32, %arg2: memref<8x512xf32, #tpu.memory_space<vmem>>, %arg3: memref<1x512xf32, #tpu.memory_space<vmem>>, %arg4: memref<8x512xf32, #tpu.memory_space<vmem>>) attributes {dimension_semantics = [#tpu.dimension_semantics<parallel>, #tpu.dimension_semantics<parallel>], iteration_bounds = array<i64: 1, 2>, scalar_prefetch = 0 : i64, scratch_operands = 0 : i64, tpu.core_type = #tpu.core_type<tc>, window_params = [{transform_indices = @transform_0, window_bounds = array<i64: 8, 512>}, {transform_indices = @transform_1, window_bounds = array<i64: 1, 512>}, {transform_indices = @transform_2, window_bounds = array<i64: 8, 512>}]} {
    %c0 = arith.constant 0 : index
    %c0_0 = arith.constant 0 : index
    %0 = vector.load %arg2[%c0, %c0_0] : memref<8x512xf32, #tpu.memory_space<vmem>>, vector<8x512xf32>
    %c0_1 = arith.constant 0 : index
    %c0_2 = arith.constant 0 : index
    %1 = vector.load %arg3[%c0_1, %c0_2] : memref<1x512xf32, #tpu.memory_space<vmem>>, vector<1x512xf32>
    %2 = vector.broadcast %1 : vector<1x512xf32> to vector<8x512xf32>
    %3 = arith.mulf %0, %2 : vector<8x512xf32>
    %c0_3 = arith.constant 0 : index
    %c0_4 = arith.constant 0 : index
    %4 = vector.load %arg4[%c0_3, %c0_4] : memref<8x512xf32, #tpu.memory_space<vmem>>, vector<8x512xf32>
    tpu.vector_store %arg4[%c0_3, %c0_4], %3 {strides = array<i32>} : memref<8x512xf32, #tpu.memory_space<vmem>>, vector<8x512xf32>,
    return
  }
  func.func @transform_0(%arg0: i32, %arg1: i32) -> (i32, i32) {
    %c0_i32 = arith.constant 0 : i32
    return %arg0, %arg1 : i32, i32
  }
  func.func @transform_1(%arg0: i32, %arg1: i32) -> (i32, i32) {
    %c0_i32 = arith.constant 0 : i32
    %c0_i32_0 = arith.constant 0 : i32
    return %c0_i32, %arg1 : i32, i32
  }
  func.func @transform_2(%arg0: i32, %arg1: i32) -> (i32, i32) {
    %c0_i32 = arith.constant 0 : i32
    return %arg0, %arg1 : i32, i32
  }
}

</mosaic_0001>

<llo_original>
// kernel: tpu_custom_call.1
$region0: #{tpu_custom_call.1}
  #allocation0 [shape = 'u32[]', space=smem, size = 0x4, offset = 0x4, fixed_abs, tag = 'smem constant byte address 0x4 - core index']
  #allocation1 [shape = 'u32[144,128]{1,0:T(1,128)}', space=vmem, size = 0x12000, scoped, tag = 'internal scratch']
  %s0 = inlined_call_operand.hbm [shape: f32[2,1024], index: 0, kind: input, shape index: {}]
  %s1 = inlined_call_operand.hbm [shape: f32[1,1024], index: 1, kind: input, shape index: {}]
  %s2 = inlined_call_operand.hbm [shape: f32[2,1024], index: 2, kind: output, shape index: {}]
  %s3 = sld [smem:[#allocation0]]
  $region49: #{tpu_custom_call.1} parent=0
    _
  %s5 = ssub.s32 1, %s3
  %s6 = scalar_select 0, %s5, %s3
  $region1: #{tpu_custom_call.1} parent=0
    #allocation2 [shape = 'u8[32768]{0}', space=vmem, size = 0x8000, scoped, tag = 'input window, operand 0']
    #allocation3 [shape = 's32[2]{0}', space=sflag, size = 0x8, scoped, tag = 'scoped memory for tpu_custom_call.1']
    #allocation4 [shape = 's32[2]{0}', space=sflag, size = 0x8, scoped, tag = 'scoped memory for tpu_custom_call.1']
    #allocation5 [shape = 'u8[4096]{0}', space=vmem, size = 0x1000, scoped, tag = 'input window, operand 1']
    #allocation6 [shape = 's32[2]{0}', space=sflag, size = 0x8, scoped, tag = 'scoped memory for tpu_custom_call.1']
    #allocation7 [shape = 'u8[32768]{0}', space=vmem, size = 0x8000, scoped, tag = 'output window, operand 0']
    %7 = vsyncpa [#allocation3], 0
    %s8 = scalar_lea.sflag [#allocation3], 1
    %9 = vsyncpa %s8, 0
    %10 = vsyncpa [#allocation6], 0
    %s11 = scalar_lea.sflag [#allocation6], 1
    %12 = vsyncpa %s11, 0
    %13 = vsyncpa [#allocation4], 0
    %s14 = scalar_lea.sflag [#allocation4], 1
    %15 = vsyncpa %s14, 0
    loop: start=0, step=1, limit=4
    $region2: #{tpu_custom_call.1} parent=1 // loop_pre_header
      _
    $region3: #{tpu_custom_call.1} parent=1 // loop_header
      %s17 = sphi 0, %s21
      %p18 = scmp.ge.s32.totalorder %s17, 4
      %s24 = sphi 0, %s36
      %s25 = sphi 0, %s32
      %s26 = sphi 0, %s24
      %s27 = sphi 0, %s25
      %s28 = sphi 0, %s26
      %s29 = sphi 0, %s27
      %s41 = sphi 0, %s43
      %s44 = sphi 0, %s41
      %s45 = sphi 0, %s44
      %s61 = sphi 0, %s45
      %s67 = sphi 0, %s69
      %s70 = sphi 0, %s67
      %s71 = sphi 0, %s70
      %s87 = sphi 0, %s71
      %s95 = sphi 0, %s97
      %s98 = sphi 0, %s95
      %s99 = sphi 0, %s98
      %s115 = sphi 0, %s99
    $region4: #{tpu_custom_call.1} parent=1 // loop_header_branch
      %20 = sbr.rel (%p18) target = $region8
    $region5: #{tpu_custom_call.1} parent=1 // loop_body
      %s22 = ssub.s32 %s17, 1
      %s23 = ssub.s32 %s17, 2
      %s30 = sadd.s32 1, %s25
      %p31 = scmp.ge.s32.totalorder %s30, 2
      %s32 = scalar_select %p31, 0, %s30
      %s33 = sadd.s32 1, %s24
      %s34 = scalar_select %p31, %s33, %s24
      %p35 = scmp.ge.s32.totalorder %s34, 1
      %s36 = scalar_select %p35, 0, %s34
      %s37 = ssub.s32 %s24, %s36
      %s38 = ssub.s32 %s25, %s32
      %s39 = sor.u32 %s37, %s38
      %p40 = scmp.eq.s32.totalorder %s39, 0
      %s42 = sadd.s32 %s41, 1
      %s43 = scalar_select %p40, %s41, %s42
      %p46 = pneg %p40
      %p47 = scmp.eq.s32.totalorder %s17, 1
      %p48 = por %p46, %p47
      %p49 = scmp.ne.s32.totalorder %s41, %s44
      %p50 = scmp.eq.s32.totalorder %s17, 0
      %p51 = por %p49, %p50
      %p52 = scmp.ne.s32.totalorder %s41, %s44
      %p53 = scmp.eq.s32.totalorder %s22, 1
      %p54 = por %p52, %p53
      %p55 = scmp.ne.s32.totalorder %s44, %s45
      %p56 = scmp.eq.s32.totalorder %s22, 0
      %p57 = por %p55, %p56
      %p58 = scmp.ne.s32.totalorder %s44, %s45
      %p59 = scmp.eq.s32.totalorder %s23, 1
      %p60 = por %p58, %p59
      %p62 = scmp.ne.s32.totalorder %s45, %s61
      %p63 = scmp.eq.s32.totalorder %s23, 0
      %p64 = por %p62, %p63
      %s65 = ssub.s32 %s25, %s32
      %p66 = scmp.eq.s32.totalorder %s65, 0
      %s68 = sadd.s32 %s67, 1
      %s69 = scalar_select %p66, %s67, %s68
      %p72 = pneg %p66
      %p73 = scmp.eq.s32.totalorder %s17, 1
      %p74 = por %p72, %p73
      %p75 = scmp.ne.s32.totalorder %s67, %s70
      %p76 = scmp.eq.s32.totalorder %s17, 0
      %p77 = por %p75, %p76
      %p78 = scmp.ne.s32.totalorder %s67, %s70
      %p79 = scmp.eq.s32.totalorder %s22, 1
      %p80 = por %p78, %p79
      %p81 = scmp.ne.s32.totalorder %s70, %s71
      %p82 = scmp.eq.s32.totalorder %s22, 0
      %p83 = por %p81, %p82
      %p84 = scmp.ne.s32.totalorder %s70, %s71
      %p85 = scmp.eq.s32.totalorder %s23, 1
      %p86 = por %p84, %p85
      %p88 = scmp.ne.s32.totalorder %s71, %s87
      %p89 = scmp.eq.s32.totalorder %s23, 0
      %p90 = por %p88, %p89
      %s91 = ssub.s32 %s24, %s36
      %s92 = ssub.s32 %s25, %s32
      %s93 = sor.u32 %s91, %s92
      %p94 = scmp.eq.s32.totalorder %s93, 0
      %s96 = sadd.s32 %s95, 1
      %s97 = scalar_select %p94, %s95, %s96
      %p100 = pneg %p94
      %p101 = scmp.eq.s32.totalorder %s17, 1
      %p102 = por %p100, %p101
      %p103 = scmp.ne.s32.totalorder %s95, %s98
      %p104 = scmp.eq.s32.totalorder %s17, 0
      %p105 = por %p103, %p104
      %p106 = scmp.ne.s32.totalorder %s95, %s98
      %p107 = scmp.eq.s32.totalorder %s22, 1
      %p108 = por %p106, %p107
      %p109 = scmp.ne.s32.totalorder %s98, %s99
      %p110 = scmp.eq.s32.totalorder %s22, 0
      %p111 = por %p109, %p110
      %p112 = scmp.ne.s32.totalorder %s98, %s99
      %p113 = scmp.eq.s32.totalorder %s23, 1
      %p114 = por %p112, %p113
      %p116 = scmp.ne.s32.totalorder %s99, %s115
      %p117 = scmp.eq.s32.totalorder %s23, 0
      %p118 = por %p116, %p117
      %p119 = scmp.le.s32.totalorder 1, %s17
      %p120 = scmp.lt.s32.totalorder %s17, 3
      %p121 = pnand %p119, %p120
      %p122 = pneg %p121
      // Predicated region
      $region9: #{tpu_custom_call.1} parent=5 // pred_check
        _
      $region10: #{tpu_custom_call.1} parent=5 // pred_check_branch
        %124 = sbr.rel (%p121) target = $region12
      $region11: #{tpu_custom_call.1} parent=5 // pred_region
        %s125 = ssub.s32 %s17, 1
      $region12: #{tpu_custom_call.1} parent=5 // pred_fallthru
        _
      %p126 = scmp.lt.s32.totalorder %s17, 2
      // Predicated region
      $region13: #{tpu_custom_call.1} parent=5 // pred_check
        %p127 = pneg %p126
      $region14: #{tpu_custom_call.1} parent=5 // pred_check_branch
        %129 = sbr.rel (%p127) target = $region16
      $region15: #{tpu_custom_call.1} parent=5 // pred_region
        // Predicated region
        $region17: #{tpu_custom_call.1} parent=15 // pred_check
          %p130 = pneg %p51
        $region18: #{tpu_custom_call.1} parent=15 // pred_check_branch
          %132 = sbr.rel (%p130) target = $region20
        $region19: #{tpu_custom_call.1} parent=15 // pred_region
          %s133 = sand.u32 %s41, 1
          %s134 = scalar_lea.sflag [#allocation3], %s133
          %s135 = sand.u32 %s41, 1
          %s136 = smul.addr %s135, 32
          %s137 = scalar_lea.vmem [#allocation2], %s136
          %s138 = smul.u32 4, %s24
          %s139 = smul.u32 4, %s25
          %s140 = ssub.s32 1, %s138
          %s141 = smul.u32 32, %s140
          %s142 = smul.u32 %s141, 4
          %s144 = ssub.s32 512, %s142
          %145 = vsyncadd %s134, %s144
          %p146 = scmp.ne.s32.totalorder 0, %s142
          %s147 = smul.addr %s138, 8
          %s148 = sadd.s32 %s139, %s147
          %s149 = smul.addr %s148, 32
          %s150 = scalar_lea.hbm %s0, %s149
          %s151 = smul.u32 8, %s140
          %s152 = sshll.u32 %s137, 4
          %s153 = int_to_ptr.vmem [resolvable:$true] %s152
          %s154 = sshll.u32 %s151, 4
          %158 = dma.hbm_to_vmem [thread:$0]  (%p146), %s150, %s154, %s153, %s134, 256, 128, 8
        $region20: #{tpu_custom_call.1} parent=15 // pred_fallthru
          _
        // Predicated region
        $region21: #{tpu_custom_call.1} parent=15 // pred_check
          %p159 = pneg %p77
        $region22: #{tpu_custom_call.1} parent=15 // pred_check_branch
          %161 = sbr.rel (%p159) target = $region24
        $region23: #{tpu_custom_call.1} parent=15 // pred_region
          %s162 = sand.u32 %s67, 1
          %s163 = scalar_lea.sflag [#allocation6], %s162
          %s164 = sand.u32 %s67, 1
          %s165 = smul.addr %s164, 4
          %s166 = scalar_lea.vmem [#allocation5], %s165
          %s167 = smul.u32 4, %s25
          %s169 = ssub.s32 64, 64
          %170 = vsyncadd %s163, %s169
          %s171 = smul.addr %s167, 16
          %s172 = scalar_lea.hbm %s1, %s171
          %s174 = sshll.u32 %s166, 4
          %s175 = int_to_ptr.vmem [resolvable:$true] %s174
          %177 = dma.hbm_to_vmem [thread:$0]  %s172, 64, %s175, %s163
        $region24: #{tpu_custom_call.1} parent=15 // pred_fallthru
          _
      $region16: #{tpu_custom_call.1} parent=5 // pred_fallthru
        _
      %p178 = scmp.le.s32.totalorder 1, %s17
      %p179 = scmp.lt.s32.totalorder %s17, 3
      %p180 = pnand %p178, %p179
      %p181 = pneg %p180
      // Predicated region
      $region25: #{tpu_custom_call.1} parent=5 // pred_check
        _
      $region26: #{tpu_custom_call.1} parent=5 // pred_check_branch
        %183 = sbr.rel (%p180) target = $region28
      $region27: #{tpu_custom_call.1} parent=5 // pred_region
        %s184 = ssub.s32 %s17, 1
        %s185 = sand.u32 %s44, 1
        %s186 = scalar_lea.sflag [#allocation3], %s185
        %s187 = sand.u32 %s44, 1
        %s188 = smul.addr %s187, 32
        %s189 = scalar_lea.vmem [#allocation2], %s188
        // Predicated region
        $region29: #{tpu_custom_call.1} parent=27 // pred_check
          %p190 = pneg %p57
        $region30: #{tpu_custom_call.1} parent=27 // pred_check_branch
          %192 = sbr.rel (%p190) target = $region32
        $region31: #{tpu_custom_call.1} parent=27 // pred_region
          %193 = dma.done %s186, 512
        $region32: #{tpu_custom_call.1} parent=27 // pred_fallthru
          _
        %s194 = sand.u32 %s70, 1
        %s195 = scalar_lea.sflag [#allocation6], %s194
        %s196 = sand.u32 %s70, 1
        %s197 = smul.addr %s196, 4
        %s198 = scalar_lea.vmem [#allocation5], %s197
        // Predicated region
        $region33: #{tpu_custom_call.1} parent=27 // pred_check
          %p199 = pneg %p83
        $region34: #{tpu_custom_call.1} parent=27 // pred_check_branch
          %201 = sbr.rel (%p199) target = $region36
        $region35: #{tpu_custom_call.1} parent=27 // pred_region
          %202 = dma.done %s195, 64
        $region36: #{tpu_custom_call.1} parent=27 // pred_fallthru
          _
        %s203 = sand.u32 %s44, 1
        %s204 = scalar_lea.sflag [#allocation3], %s203
        %s205 = sand.u32 %s44, 1
        %s206 = smul.addr %s205, 32
        %s207 = scalar_lea.vmem [#allocation2], %s206
        %p208 = pneg %p57
        %p209 = pneg %p54
        %s210 = sand.u32 %s70, 1
        %s211 = scalar_lea.sflag [#allocation6], %s210
        %s212 = sand.u32 %s70, 1
        %s213 = smul.addr %s212, 4
        %s214 = scalar_lea.vmem [#allocation5], %s213
        %p215 = pneg %p83
        %p216 = pneg %p80
        %p217 = pneg %p111
        %p218 = pneg %p108
        %s219 = sand.u32 %s98, 1
        %s220 = scalar_lea.sflag [#allocation4], %s219
        %s221 = sand.u32 %s98, 1
        %s222 = smul.addr %s221, 32
        %s223 = scalar_lea.vmem [#allocation7], %s222
        %s224 = smul.u32 4, %s26
        %s225 = smul.u32 4, %s27
        %s226 = ssub.s32 1, %s224
        %s227 = smul.u32 32, %s226
        %s228 = smul.u32 %s227, 4
        %s229 = smul.u32 4, %s27
        %s230 = smul.u32 4, %s26
        %s231 = smul.u32 4, %s27
        %s232 = ssub.s32 1, %s230
        %s233 = smul.u32 32, %s232
        %s234 = smul.u32 %s233, 4
        %v235 = vld [vmem:[%s189] sm:$0xff]
        %v236 = vld [vmem:[%s189 + $0x8] sm:$0xff]
        %v237 = vld [vmem:[%s189 + $0x10] sm:$0xff]
        %v238 = vld [vmem:[%s189 + $0x18] sm:$0xff]
        %v239 = vld [vmem:[%s198] sm:$0xf]
        %v241 = vlaneseq
        %v242 = vshrl.u32 %v241, 7
        %v243 = vsub.s32 0, %v242
        %v244 = vrot.slane %v239, %v243
        %v245 = vlaneseq
        %v246 = vshrl.u32 %v245, 7
        %v247 = vsub.s32 1, %v246
        %v248 = vrot.slane %v239, %v247
        %v249 = vlaneseq
        %v250 = vshrl.u32 %v249, 7
        %v251 = vsub.s32 2, %v250
        %v252 = vrot.slane %v239, %v251
        %v253 = vlaneseq
        %v254 = vshrl.u32 %v253, 7
        %v255 = vsub.s32 3, %v254
        %v256 = vrot.slane %v239, %v255
        %v257 = vcombine.low %v244, %v248
        %v258 = vcombine.high %v244, %v248
        %v259 = vcombine.low %v252, %v256
        %v260 = vcombine.high %v252, %v256
        %v262 = vunpack.c.l.s4 1983009808
        %v263 = vunpack.c.0.s8 %v262
        %v264 = vlaneseq
        %v265 = vshrl.u32 %v264, 7
        %v266 = vsub.s32 %v263, %v265
        %v267 = vrot.slane %v257, %v266
        %v269 = vunpack.c.l.s4 1983009808
        %v270 = vunpack.c.0.s8 %v269
        %v271 = vlaneseq
        %v272 = vshrl.u32 %v271, 7
        %v273 = vsub.s32 %v270, %v272
        %v274 = vrot.slane %v258, %v273
        %v276 = vunpack.c.l.s4 1983009808
        %v277 = vunpack.c.0.s8 %v276
        %v278 = vlaneseq
        %v279 = vshrl.u32 %v278, 7
        %v280 = vsub.s32 %v277, %v279
        %v281 = vrot.slane %v259, %v280
        %v283 = vunpack.c.l.s4 1983009808
        %v284 = vunpack.c.0.s8 %v283
        %v285 = vlaneseq
        %v286 = vshrl.u32 %v285, 7
        %v287 = vsub.s32 %v284, %v286
        %v288 = vrot.slane %v260, %v287
        %v289 = vcombine.low %v267, %v281
        %v290 = vcombine.high %v267, %v281
        %v291 = vcombine.low %v274, %v288
        %v292 = vcombine.high %v274, %v288
        %v297 = vmul.f32 %v235, %v289
        %v298 = vmul.f32 %v236, %v290
        %v299 = vmul.f32 %v237, %v291
        %v300 = vmul.f32 %v238, %v292
        %301 = vst [vmem:[%s223] sm:$0xff] %v297
        %302 = vst [vmem:[%s223 + $0x8] sm:$0xff] %v298
        %303 = vst [vmem:[%s223 + $0x10] sm:$0xff] %v299
        %304 = vst [vmem:[%s223 + $0x18] sm:$0xff] %v300
        %s305 = sand.u32 %s98, 1
        %s306 = scalar_lea.sflag [#allocation4], %s305
        %s307 = sand.u32 %s98, 1
        %s308 = smul.addr %s307, 32
        %s309 = scalar_lea.vmem [#allocation7], %s308
        // Predicated region
        $region37: #{tpu_custom_call.1} parent=27 // pred_check
          %p310 = pneg %p108
        $region38: #{tpu_custom_call.1} parent=27 // pred_check_branch
          %312 = sbr.rel (%p310) target = $region40
        $region39: #{tpu_custom_call.1} parent=27 // pred_region
          %s313 = smul.u32 4, %s26
          %s314 = smul.u32 4, %s27
          %s315 = ssub.s32 1, %s313
          %s316 = smul.u32 32, %s315
          %s317 = smul.u32 %s316, 4
          %s319 = ssub.s32 512, %s317
          %320 = vsyncadd %s306, %s319
          %p321 = scmp.ne.s32.totalorder 0, %s317
          %s322 = smul.addr %s313, 8
          %s323 = sadd.s32 %s314, %s322
          %s324 = smul.addr %s323, 32
          %s325 = scalar_lea.hbm %s2, %s324
          %s326 = smul.u32 8, %s315
          %s327 = sshll.u32 %s309, 4
          %s328 = int_to_ptr.vmem [resolvable:$true] %s327
          %s329 = sshll.u32 %s326, 4
          %333 = dma.vmem_to_hbm [thread:$0]  (%p321), %s328, %s329, %s325, %s306, 128, 256, 8
        $region40: #{tpu_custom_call.1} parent=27 // pred_fallthru
          _
      $region28: #{tpu_custom_call.1} parent=5 // pred_fallthru
        _
      %p334 = scmp.le.s32.totalorder 2, %s17
      // Predicated region
      $region41: #{tpu_custom_call.1} parent=5 // pred_check
        %p335 = pneg %p334
      $region42: #{tpu_custom_call.1} parent=5 // pred_check_branch
        %337 = sbr.rel (%p335) target = $region44
      $region43: #{tpu_custom_call.1} parent=5 // pred_region
        %s338 = ssub.s32 %s17, 2
        // Predicated region
        $region45: #{tpu_custom_call.1} parent=43 // pred_check
          %p339 = pneg %p114
        $region46: #{tpu_custom_call.1} parent=43 // pred_check_branch
          %341 = sbr.rel (%p339) target = $region48
        $region47: #{tpu_custom_call.1} parent=43 // pred_region
          %s342 = sand.u32 %s99, 1
          %s343 = scalar_lea.sflag [#allocation4], %s342
          %s344 = sand.u32 %s99, 1
          %s345 = smul.addr %s344, 32
          %s346 = scalar_lea.vmem [#allocation7], %s345
          %347 = dma.done %s343, 512
        $region48: #{tpu_custom_call.1} parent=43 // pred_fallthru
          _
      $region44: #{tpu_custom_call.1} parent=5 // pred_fallthru
        _
    $region6: #{tpu_custom_call.1} parent=1 // loop_footer
      %s21 = sadd.s32 1, %s17
    $region7: #{tpu_custom_call.1} parent=1 // loop_footer_branch
      %16 = sbr.rel target = $region3
    $region8: #{tpu_custom_call.1} parent=1 // loop_exit
      _
    %348 = vsyncpa [#allocation3], 1
    %s349 = scalar_lea.sflag [#allocation3], 1
    %350 = vsyncpa %s349, 1
    %351 = vsyncpa [#allocation6], 1
    %s352 = scalar_lea.sflag [#allocation6], 1
    %353 = vsyncpa %s352, 1
    %354 = vsyncpa [#allocation4], 1
    %s355 = scalar_lea.sflag [#allocation4], 1
    %356 = vsyncpa %s355, 1

</llo_original>
